<compile_context>
chip_gen: v6e
topology: v6e:2x2x1
jax: 0.10.0
libtpu: 0.0.40
codegen_flags: <defaults>
</compile_context>

<pallas_src>
import functools
import math

import jax
import jax.numpy as jnp
from jax.experimental import pallas as pl
from jax.experimental.pallas import tpu as pltpu


def _round_up(x: int, m: int) -> int:
    return (x + m - 1) // m * m


def _tpu_generation() -> int:
    """Best-effort TPU generation from device_kind (defaults to 6)."""
    try:
        kind = jax.devices()[0].device_kind.lower()
    except Exception:  # pragma: no cover
        return 6
    for g in (7, 6, 5, 4, 3, 2):
        if str(g) in kind:
            return g
    return 6


def _vmem_tile_bytes(shape, dtype) -> int:
    """Bytes an array occupies in VMEM (last two dims padded to native tile)."""
    itemsize = jnp.dtype(dtype).itemsize
    sub = 8 * max(1, 4 // itemsize)          # 8 (f32), 16 (bf16)
    if len(shape) == 1:
        r, c = 1, int(shape[0])
    else:
        r, c = int(shape[-2]), int(shape[-1])
    lead = 1
    for d in shape[:-2]:
        lead *= int(d)
    return lead * _round_up(r, sub) * _round_up(c, 128) * itemsize


# ----------------------------------------------------------------------------
# Pallas kernel: full MLP (matmuls + biases + ReLUs) writing one fused,
# lane-dense output slab.
# ----------------------------------------------------------------------------
def make_mlp_kernel(num_layers: int, has_state: bool):
    def kernel(*refs):
        idx = 0
        x = refs[idx][...]; idx += 1                   # bf16 [tb, in_dim_p]
        if has_state:
            s = refs[idx][...]; idx += 1               # bf16 [tb, sdim_p]
        w0x = refs[idx][...]; idx += 1                 # bf16 [in_dim_p, n0_p]
        if has_state:
            w0s = refs[idx][...]; idx += 1             # bf16 [sdim_p, n0_p]
        b0 = refs[idx][...]; idx += 1                  # f32  [1, n0_p]

        # Layer 0 (split matmul avoids a wrapper-side concat round-trip).
        h = jnp.dot(x, w0x, preferred_element_type=jnp.float32)
        if has_state:
            h = h + jnp.dot(s, w0s, preferred_element_type=jnp.float32)
        h = h + b0
        if num_layers > 1:
            h = jnp.maximum(h, 0.0)

        # Remaining layers (unrolled Python loop — full LLO visibility).
        for l in range(1, num_layers):
            w = refs[idx][...]; idx += 1               # bf16 [prev_p, n_p]
            b = refs[idx][...]; idx += 1               # f32  [1, n_p]
            h = jnp.dot(h.astype(jnp.bfloat16), w,
                        preferred_element_type=jnp.float32) + b
            if l < num_layers - 1:
                h = jnp.maximum(h, 0.0)

        out_ref = refs[idx]                            # [tb, total_out_p]
        out_ref[...] = h.astype(out_ref.dtype)

    return kernel


# ----------------------------------------------------------------------------
# Wrapper: padding / tiling / VMEM budgeting / output split / Beta sample.
# ----------------------------------------------------------------------------
def ponder_bayesian_mlp_forward(x, params, out_dim, state_dim, key,
                                state=None, batch_tile=512,
                                out_dtype=jnp.bfloat16):
    """Returns (y_hat_n, state, lambda_n, (alpha, beta)) like the torch module."""
    batch = x.shape[0]
    x_flat = x.reshape(batch, -1)
    in_dim = x_flat.shape[1]
    total_out_dim = out_dim + state_dim + 2
    num_layers = len(params)
    has_state = state is not None

    gen = _tpu_generation()
    # v6e/v7x MXU is 2x256x256: widths >128 pad to 256-multiples to avoid
    # half-utilized passes; v5e (4x128x128) keeps 128-multiples.
    mxu_n = 256 if gen >= 6 else 128
    vmem_cap = (48 << 20) if gen >= 7 else (100 << 20)   # v7x: 64 MiB/TC physical

    def _pad_width(f):
        return 128 if f <= 128 else _round_up(f, mxu_n)

    # Padded contraction (K) dims for layer 0.
    in_dim_p = _round_up(in_dim, 128) if in_dim > 128 else in_dim
    sdim_p = _round_up(state_dim, 8) if has_state else 0

    fan_outs = [w.shape[1] for (w, _) in params]       # hiddens..., total_out
    fan_outs_p = [_pad_width(f) for f in fan_outs]
    total_out_p = fan_outs_p[-1]

    # ---- VMEM-resident weights / biases (constant index maps) --------------
    def _resident2d(arr):
        return pl.BlockSpec(arr.shape, lambda i: (0, 0))

    resident_inputs, resident_specs = [], []

    w0, b0 = params[0]
    w0 = jnp.asarray(w0, jnp.float32)
    n0_p = fan_outs_p[0]
    pad_n0 = n0_p - w0.shape[1]
    w0x = jnp.pad(w0[:in_dim],
                  ((0, in_dim_p - in_dim), (0, pad_n0))).astype(jnp.bfloat16)
    resident_inputs.append(w0x); resident_specs.append(_resident2d(w0x))
    if has_state:
        w0s = jnp.pad(w0[in_dim:],
                      ((0, sdim_p - state_dim), (0, pad_n0))).astype(jnp.bfloat16)
        resident_inputs.append(w0s); resident_specs.append(_resident2d(w0s))
    b0p = jnp.pad(jnp.asarray(b0, jnp.float32).reshape(1, -1),
                  ((0, 0), (0, pad_n0)))
    resident_inputs.append(b0p); resident_specs.append(_resident2d(b0p))

    prev_p = n0_p
    for l in range(1, num_layers):
        w, b = params[l]
        w = jnp.asarray(w, jnp.float32)
        n_p = fan_outs_p[l]
        wp = jnp.pad(w, ((0, prev_p - w.shape[0]),
                         (0, n_p - w.shape[1]))).astype(jnp.bfloat16)
        bp = jnp.pad(jnp.asarray(b, jnp.float32).reshape(1, -1),
                     ((0, 0), (0, n_p - w.shape[1])))
        resident_inputs += [wp, bp]
        resident_specs += [_resident2d(wp), _resident2d(bp)]
        prev_p = n_p

    resident_bytes = sum(_vmem_tile_bytes(a.shape, a.dtype)
                         for a in resident_inputs)

    # ---- batch tile selection under the explicit VMEM budget ----------------
    b_align = 16                                        # bf16 sublane packing
    b_pad0 = _round_up(max(batch, 1), b_align)
    tb = min(b_pad0, _round_up(max(batch_tile, b_align), b_align))

    def _vmem_need(t):
        # Default pipeline double-buffers every block-shaped input/output,
        # including the constant-index residents.
        stream = 2 * _vmem_tile_bytes((t, in_dim_p), jnp.bfloat16)
        if has_state:
            stream += 2 * _vmem_tile_bytes((t, sdim_p), jnp.bfloat16)
        stream += 2 * _vmem_tile_bytes((t, total_out_p), out_dtype)
        acts = sum(_vmem_tile_bytes((t, n), jnp.float32) for n in fan_outs_p)
        return 2 * resident_bytes + stream + acts + (2 << 20)

    # Shrink tb only if the budget demands it.  (At much larger scale the
    # preferred fix is an extra "arbitrary" N-tiling grid axis that streams
    # the widest weight per N-tile instead of cutting the MXU M dimension.)
    while tb > b_align and _vmem_need(tb) > vmem_cap:
        tb = max(b_align, (tb // 2 // b_align) * b_align)

    b_pad = _round_up(max(batch, 1), tb)
    grid = (b_pad // tb,)
    vmem_limit = int(min(vmem_cap, max(32 << 20, int(_vmem_need(tb) * 1.5))))

    # ---- streamed inputs (bf16, pad only when actually needed) --------------
    x_b = x_flat.astype(jnp.bfloat16)
    if b_pad != batch or in_dim_p != in_dim:
        x_b = jnp.pad(x_b, ((0, b_pad - batch), (0, in_dim_p - in_dim)))
    kernel_inputs = [x_b]
    in_specs = [pl.BlockSpec((tb, in_dim_p), lambda i: (i, 0))]

    if has_state:
        s_b = state.astype(jnp.bfloat16)
        if b_pad != batch or sdim_p != state_dim:
            s_b = jnp.pad(s_b, ((0, b_pad - batch), (0, sdim_p - state_dim)))
        kernel_inputs.append(s_b)
        in_specs.append(pl.BlockSpec((tb, sdim_p), lambda i: (i, 0)))

    kernel_inputs += resident_inputs
    in_specs += resident_specs

    # ---- advisory cost estimate ---------------------------------------------
    k0 = in_dim_p + (sdim_p if has_state else 0)
    fan_ins_p = [k0] + fan_outs_p[:-1]
    flops = 2 * b_pad * sum(fi * fo for fi, fo in zip(fan_ins_p, fan_outs_p))
    bytes_accessed = (sum(int(a.size) * a.dtype.itemsize for a in kernel_inputs)
                      + b_pad * total_out_p * jnp.dtype(out_dtype).itemsize)

    out_full = pl.pallas_call(
        make_mlp_kernel(num_layers, has_state),
        grid=grid,
        in_specs=in_specs,
        out_specs=pl.BlockSpec((tb, total_out_p), lambda i: (i, 0)),
        out_shape=jax.ShapeDtypeStruct((b_pad, total_out_p), out_dtype),
        compiler_params=pltpu.CompilerParams(
            dimension_semantics=("parallel",),
            vmem_limit_bytes=vmem_limit),
        cost_estimate=pl.CostEstimate(
            flops=int(flops), transcendentals=0,
            bytes_accessed=int(bytes_accessed)),
    )(*kernel_inputs)

    # ---- unpad + tensor_split + lambda clamp (free XLA slices, f32) ---------
    out = out_full[:batch, :total_out_dim].astype(jnp.float32)
    y_hat = out[:, :out_dim]
    new_state = out[:, out_dim:out_dim + state_dim]
    lam = jnp.maximum(out[:, out_dim + state_dim:], 0.0) + 1e-7
    alpha, beta = lam[:, 0], lam[:, 1]

    # TODO(synk): Beta.rsample has no clean Pallas primitive (rejection-loop
    # gamma sampling); sampling is done in plain JAX (same distribution,
    # different reparameterization path than torch's rsample).
    lambda_n = jax.random.beta(key, alpha, beta)
    return y_hat, new_state, lambda_n, (alpha, beta)


# ----------------------------------------------------------------------------
# Deterministic parameter init (matches torch.nn.Linear default bounds).
# Weights stored as [fan_in, fan_out].
# ----------------------------------------------------------------------------
def init_params(key, in_dim, hidden_dims, out_dim, state_dim):
    total_out_dim = out_dim + state_dim + 2
    dims = [in_dim + state_dim] + list(hidden_dims) + [total_out_dim]
    params = []
    for fan_in, fan_out in zip(dims[:-1], dims[1:]):
        key, kw, kb = jax.random.split(key, 3)
        bound = 1.0 / math.sqrt(fan_in)
        w = jax.random.uniform(kw, (fan_in, fan_out), jnp.float32, -bound, bound)
        b = jax.random.uniform(kb, (fan_out,), jnp.float32, -bound, bound)
        params.append((w, b))
    return params


if __name__ == "__main__":
    # Small shapes consistent with the module: x [B, C, H, W] -> in_dim = C*H*W.
    B, C, H, W = 2, 4, 2, 2
    in_dim = C * H * W            # 16
    hidden_dims = [32, 32]
    out_dim = 8
    state_dim = 6

    root = jax.random.PRNGKey(0)
    k_x, k_params, k_beta1, k_beta2 = jax.random.split(root, 4)

    x = jax.random.normal(k_x, (B, C, H, W), dtype=jnp.float32)
    params = init_params(k_params, in_dim, hidden_dims, out_dim, state_dim)

    fwd = functools.partial(ponder_bayesian_mlp_forward,
                            out_dim=out_dim, state_dim=state_dim)

    # Ponder step 1: state=None (zero state; its matmul is skipped).
    y1, s1, lam1, (a1, b1) = fwd(x, params, key=k_beta1)
    # Ponder step 2: carry the produced state (exercises the state path).
    y2, s2, lam2, (a2, b2) = fwd(x, params, key=k_beta2, state=s1)

    jax.block_until_ready((y1, s1, lam1, a1, b1, y2, s2, lam2, a2, b2))

    for (y, s, lam, a, b) in ((y1, s1, lam1, a1, b1), (y2, s2, lam2, a2, b2)):
        assert y.shape == (B, out_dim)
        assert s.shape == (B, state_dim)
        assert lam.shape == (B,)
        assert a.shape == (B,) and b.shape == (B,)
        assert bool(jnp.all(a >= 1e-7)) and bool(jnp.all(b >= 1e-7))
        assert bool(jnp.all(jnp.isfinite(y))) and bool(jnp.all(jnp.isfinite(s)))
    print("KERNEL_OK")
</pallas_src>

<mosaic_0001>
module attributes {stable_mosaic.version = 11 : i64} {
  func.func @kernel(%arg0: i32, %arg1: memref<16x16xbf16, #tpu.memory_space<vmem>>, %arg2: memref<16x128xbf16, #tpu.memory_space<vmem>>, %arg3: memref<1x128xf32, #tpu.memory_space<vmem>>, %arg4: memref<128x128xbf16, #tpu.memory_space<vmem>>, %arg5: memref<1x128xf32, #tpu.memory_space<vmem>>, %arg6: memref<128x128xbf16, #tpu.memory_space<vmem>>, %arg7: memref<1x128xf32, #tpu.memory_space<vmem>>, %arg8: memref<16x128xbf16, #tpu.memory_space<vmem>>) attributes {dimension_semantics = [#tpu.dimension_semantics<parallel>], iteration_bounds = array<i64: 1>, scalar_prefetch = 0 : i64, scratch_operands = 0 : i64, tpu.core_type = #tpu.core_type<tc>, window_params = [{transform_indices = @transform_0, window_bounds = array<i64: 16, 16>}, {pipeline_mode = #tpu.pipeline_mode<synchronous>, transform_indices = @transform_1, window_bounds = array<i64: 16, 128>}, {pipeline_mode = #tpu.pipeline_mode<synchronous>, transform_indices = @transform_2, window_bounds = array<i64: 1, 128>}, {pipeline_mode = #tpu.pipeline_mode<synchronous>, transform_indices = @transform_3, window_bounds = array<i64: 128, 128>}, {pipeline_mode = #tpu.pipeline_mode<synchronous>, transform_indices = @transform_4, window_bounds = array<i64: 1, 128>}, {pipeline_mode = #tpu.pipeline_mode<synchronous>, transform_indices = @transform_5, window_bounds = array<i64: 128, 128>}, {pipeline_mode = #tpu.pipeline_mode<synchronous>, transform_indices = @transform_6, window_bounds = array<i64: 1, 128>}, {transform_indices = @transform_7, window_bounds = array<i64: 16, 128>}]} {
    %c0 = arith.constant 0 : index
    %c0_0 = arith.constant 0 : index
    %0 = vector.load %arg1[%c0, %c0_0] : memref<16x16xbf16, #tpu.memory_space<vmem>>, vector<16x16xbf16>
    %c0_1 = arith.constant 0 : index
    %c0_2 = arith.constant 0 : index
    %1 = vector.load %arg2[%c0_1, %c0_2] : memref<16x128xbf16, #tpu.memory_space<vmem>>, vector<16x128xbf16>
    %c0_3 = arith.constant 0 : index
    %c0_4 = arith.constant 0 : index
    %2 = vector.load %arg3[%c0_3, %c0_4] : memref<1x128xf32, #tpu.memory_space<vmem>>, vector<1x128xf32>
    %cst = arith.constant dense<0.000000e+00> : vector<16x128xf32>
    %3 = tpu.matmul %0, %1, %cst {dimension_numbers = #tpu.dot_dimension_numbers<[1], [0], [0], [1], [0, 0, 1, 1], [], []>} : vector<16x16xbf16>, vector<16x128xbf16>, vector<16x128xf32> -> vector<16x128xf32>
    %4 = vector.broadcast %2 : vector<1x128xf32> to vector<16x128xf32>
    %5 = arith.addf %3, %4 : vector<16x128xf32>
    %cst_5 = arith.constant 0.000000e+00 : f32
    %6 = vector.broadcast %cst_5 : f32 to vector<16x128xf32>
    %7 = arith.maximumf %5, %6 : vector<16x128xf32>
    %c0_6 = arith.constant 0 : index
    %c0_7 = arith.constant 0 : index
    %8 = vector.load %arg4[%c0_6, %c0_7] : memref<128x128xbf16, #tpu.memory_space<vmem>>, vector<128x128xbf16>
    %c0_8 = arith.constant 0 : index
    %c0_9 = arith.constant 0 : index
    %9 = vector.load %arg5[%c0_8, %c0_9] : memref<1x128xf32, #tpu.memory_space<vmem>>, vector<1x128xf32>
    %10 = arith.truncf %7 : vector<16x128xf32> to vector<16x128xbf16>
    %cst_10 = arith.constant dense<0.000000e+00> : vector<16x128xf32>
    %11 = tpu.matmul %10, %8, %cst_10 {dimension_numbers = #tpu.dot_dimension_numbers<[1], [0], [0], [1], [0, 0, 1, 1], [], []>} : vector<16x128xbf16>, vector<128x128xbf16>, vector<16x128xf32> -> vector<16x128xf32>
    %12 = vector.broadcast %9 : vector<1x128xf32> to vector<16x128xf32>
    %13 = arith.addf %11, %12 : vector<16x128xf32>
    %cst_11 = arith.constant 0.000000e+00 : f32
    %14 = vector.broadcast %cst_11 : f32 to vector<16x128xf32>
    %15 = arith.maximumf %13, %14 : vector<16x128xf32>
    %c0_12 = arith.constant 0 : index
    %c0_13 = arith.constant 0 : index
    %16 = vector.load %arg6[%c0_12, %c0_13] : memref<128x128xbf16, #tpu.memory_space<vmem>>, vector<128x128xbf16>
    %c0_14 = arith.constant 0 : index
    %c0_15 = arith.constant 0 : index
    %17 = vector.load %arg7[%c0_14, %c0_15] : memref<1x128xf32, #tpu.memory_space<vmem>>, vector<1x128xf32>
    %18 = arith.truncf %15 : vector<16x128xf32> to vector<16x128xbf16>
    %cst_16 = arith.constant dense<0.000000e+00> : vector<16x128xf32>
    %19 = tpu.matmul %18, %16, %cst_16 {dimension_numbers = #tpu.dot_dimension_numbers<[1], [0], [0], [1], [0, 0, 1, 1], [], []>} : vector<16x128xbf16>, vector<128x128xbf16>, vector<16x128xf32> -> vector<16x128xf32>
    %20 = vector.broadcast %17 : vector<1x128xf32> to vector<16x128xf32>
    %21 = arith.addf %19, %20 : vector<16x128xf32>
    %22 = arith.truncf %21 : vector<16x128xf32> to vector<16x128xbf16>
    %c0_17 = arith.constant 0 : index
    %c0_18 = arith.constant 0 : index
    %23 = vector.load %arg8[%c0_17, %c0_18] : memref<16x128xbf16, #tpu.memory_space<vmem>>, vector<16x128xbf16>
    tpu.vector_store %arg8[%c0_17, %c0_18], %22 {strides = array<i32>} : memref<16x128xbf16, #tpu.memory_space<vmem>>, vector<16x128xbf16>,
    return
  }
  func.func @transform_0(%arg0: i32) -> (i32, i32) {
    %c0_i32 = arith.constant 0 : i32
    %c0_i32_0 = arith.constant 0 : i32
    return %arg0, %c0_i32 : i32, i32
  }
  func.func @transform_1(%arg0: i32) -> (i32, i32) {
    %c0_i32 = arith.constant 0 : i32
    %c0_i32_0 = arith.constant 0 : i32
    %c0_i32_1 = arith.constant 0 : i32
    return %c0_i32, %c0_i32_0 : i32, i32
  }
  func.func @transform_2(%arg0: i32) -> (i32, i32) {
    %c0_i32 = arith.constant 0 : i32
    %c0_i32_0 = arith.constant 0 : i32
    %c0_i32_1 = arith.constant 0 : i32
    return %c0_i32, %c0_i32_0 : i32, i32
  }
  func.func @transform_3(%arg0: i32) -> (i32, i32) {
    %c0_i32 = arith.constant 0 : i32
    %c0_i32_0 = arith.constant 0 : i32
    %c0_i32_1 = arith.constant 0 : i32
    return %c0_i32, %c0_i32_0 : i32, i32
  }
  func.func @transform_4(%arg0: i32) -> (i32, i32) {
    %c0_i32 = arith.constant 0 : i32
    %c0_i32_0 = arith.constant 0 : i32
    %c0_i32_1 = arith.constant 0 : i32
    return %c0_i32, %c0_i32_0 : i32, i32
  }
  func.func @transform_5(%arg0: i32) -> (i32, i32) {
    %c0_i32 = arith.constant 0 : i32
    %c0_i32_0 = arith.constant 0 : i32
    %c0_i32_1 = arith.constant 0 : i32
    return %c0_i32, %c0_i32_0 : i32, i32
  }
  func.func @transform_6(%arg0: i32) -> (i32, i32) {
    %c0_i32 = arith.constant 0 : i32
    %c0_i32_0 = arith.constant 0 : i32
    %c0_i32_1 = arith.constant 0 : i32
    return %c0_i32, %c0_i32_0 : i32, i32
  }
  func.func @transform_7(%arg0: i32) -> (i32, i32) {
    %c0_i32 = arith.constant 0 : i32
    %c0_i32_0 = arith.constant 0 : i32
    return %arg0, %c0_i32 : i32, i32
  }
}

</mosaic_0001>

<llo_original>
// kernel: tpu_custom_call.1
$region0: #{tpu_custom_call.1}
  #allocation0 [shape = 'u32[]', space=smem, size = 0x4, offset = 0x4, fixed_abs, tag = 'smem constant byte address 0x4 - core index']
  #allocation1 [shape = 'u32[144,128]{1,0:T(1,128)}', space=vmem, size = 0x12000, scoped, tag = 'internal scratch']
  %s0 = inlined_call_operand.hbm [shape: bf16[16,16], index: 0, kind: input, shape index: {}]
  %s1 = inlined_call_operand.hbm [shape: bf16[16,128], index: 1, kind: input, shape index: {}]
  %s2 = inlined_call_operand.vmem [shape: f32[1,128], index: 2, kind: input, shape index: {}]
  %s3 = inlined_call_operand.hbm [shape: bf16[128,128], index: 3, kind: input, shape index: {}]
  %s4 = inlined_call_operand.vmem [shape: f32[1,128], index: 4, kind: input, shape index: {}]
  %s5 = inlined_call_operand.hbm [shape: bf16[128,128], index: 5, kind: input, shape index: {}]
  %s6 = inlined_call_operand.vmem [shape: f32[1,128], index: 6, kind: input, shape index: {}]
  %s7 = inlined_call_operand.hbm [shape: bf16[16,128], index: 7, kind: output, shape index: {}]
  %s8 = sld [smem:[#allocation0]]
  $region54: #{tpu_custom_call.1} parent=0
    _
  %s10 = ssub.s32 1, %s8
  %s11 = scalar_select 0, %s10, %s8
  $region1: #{tpu_custom_call.1} parent=0
    #allocation2 [shape = 'u8[4096]{0}', space=vmem, size = 0x1000, scoped, tag = 'input window, operand 0, single buffered']
    #allocation3 [shape = 's32[1]{0}', space=sflag, size = 0x4, scoped, tag = 'scoped memory for tpu_custom_call.1']
    #allocation4 [shape = 's32[1]{0}', space=sflag, size = 0x4, scoped, tag = 'scoped memory for tpu_custom_call.1']
    #allocation5 [shape = 'u8[4096]{0}', space=vmem, size = 0x1000, scoped, tag = 'input window, operand 1, single buffered']
    #allocation6 [shape = 's32[1]{0}', space=sflag, size = 0x4, scoped, tag = 'scoped memory for tpu_custom_call.1']
    #allocation7 [shape = 'u8[32768]{0}', space=vmem, size = 0x8000, scoped, tag = 'input window, operand 3, single buffered']
    #allocation8 [shape = 'u8[32768]{0}', space=vmem, size = 0x8000, scoped, tag = 'input window, operand 5, single buffered']
    #allocation9 [shape = 's32[1]{0}', space=sflag, size = 0x4, scoped, tag = 'scoped memory for tpu_custom_call.1']
    #allocation10 [shape = 'u8[4096]{0}', space=vmem, size = 0x1000, scoped, tag = 'output window, operand 0, single buffered']
    %12 = vsyncpa [#allocation3], 0
    %13 = vsyncpa [#allocation6], 0
    %14 = vsyncpa [#allocation9], 0
    %15 = vsyncpa [#allocation4], 0
    // Predicated region
    $region2: #{tpu_custom_call.1} parent=1 // pred_check
      _
    $region3: #{tpu_custom_call.1} parent=1 // pred_check_branch
      %17 = sbr.rel (0) target = $region5
    $region4: #{tpu_custom_call.1} parent=1 // pred_region
      %s19 = ssub.s32 128, 128
      %20 = vsyncadd [#allocation3], %s19
      %s21 = sshll.u32 [#allocation2], 4
      %s22 = int_to_ptr.vmem [resolvable:$true] %s21
      %27 = dma.hbm_to_vmem [thread:$0]  %s0, 128, %s22, [#allocation3], 64, 64, 4
    $region5: #{tpu_custom_call.1} parent=1 // pred_fallthru
      _
    // Predicated region
    $region6: #{tpu_custom_call.1} parent=1 // pred_check
      _
    $region7: #{tpu_custom_call.1} parent=1 // pred_check_branch
      %29 = sbr.rel (0) target = $region9
    $region8: #{tpu_custom_call.1} parent=1 // pred_region
      %s31 = ssub.s32 128, 128
      %32 = vsyncadd [#allocation6], %s31
      %s33 = sshll.u32 [#allocation5], 4
      %s34 = int_to_ptr.vmem [resolvable:$true] %s33
      %39 = dma.hbm_to_vmem [thread:$0]  %s1, 128, %s34, [#allocation6], 64, 64, 4
    $region9: #{tpu_custom_call.1} parent=1 // pred_fallthru
      _
    // Predicated region
    $region10: #{tpu_custom_call.1} parent=1 // pred_check
      _
    $region11: #{tpu_custom_call.1} parent=1 // pred_check_branch
      %41 = sbr.rel (0) target = $region13
    $region12: #{tpu_custom_call.1} parent=1 // pred_region
      _
    $region13: #{tpu_custom_call.1} parent=1 // pred_fallthru
      _
    // Predicated region
    $region14: #{tpu_custom_call.1} parent=1 // pred_check
      _
    $region15: #{tpu_custom_call.1} parent=1 // pred_check_branch
      %43 = sbr.rel (0) target = $region17
    $region16: #{tpu_custom_call.1} parent=1 // pred_region
      %s45 = ssub.s32 1024, 1024
      %46 = vsyncadd [#allocation6], %s45
      %s47 = sshll.u32 [#allocation7], 4
      %s48 = int_to_ptr.vmem [resolvable:$true] %s47
      %53 = dma.hbm_to_vmem [thread:$0]  %s3, 1024, %s48, [#allocation6], 64, 64, 4
    $region17: #{tpu_custom_call.1} parent=1 // pred_fallthru
      _
    // Predicated region
    $region18: #{tpu_custom_call.1} parent=1 // pred_check
      _
    $region19: #{tpu_custom_call.1} parent=1 // pred_check_branch
      %55 = sbr.rel (0) target = $region21
    $region20: #{tpu_custom_call.1} parent=1 // pred_region
      _
    $region21: #{tpu_custom_call.1} parent=1 // pred_fallthru
      _
    // Predicated region
    $region22: #{tpu_custom_call.1} parent=1 // pred_check
      _
    $region23: #{tpu_custom_call.1} parent=1 // pred_check_branch
      %57 = sbr.rel (0) target = $region25
    $region24: #{tpu_custom_call.1} parent=1 // pred_region
      %s59 = ssub.s32 1024, 1024
      %60 = vsyncadd [#allocation9], %s59
      %s61 = sshll.u32 [#allocation8], 4
      %s62 = int_to_ptr.vmem [resolvable:$true] %s61
      %67 = dma.hbm_to_vmem [thread:$0]  %s5, 1024, %s62, [#allocation9], 64, 64, 4
    $region25: #{tpu_custom_call.1} parent=1 // pred_fallthru
      _
    // Predicated region
    $region26: #{tpu_custom_call.1} parent=1 // pred_check
      _
    $region27: #{tpu_custom_call.1} parent=1 // pred_check_branch
      %69 = sbr.rel (0) target = $region29
    $region28: #{tpu_custom_call.1} parent=1 // pred_region
      _
    $region29: #{tpu_custom_call.1} parent=1 // pred_fallthru
      _
    // Predicated region
    $region30: #{tpu_custom_call.1} parent=1 // pred_check
      _
    $region31: #{tpu_custom_call.1} parent=1 // pred_check_branch
      %71 = sbr.rel (0) target = $region33
    $region32: #{tpu_custom_call.1} parent=1 // pred_region
      %72 = dma.done [#allocation3], 128
    $region33: #{tpu_custom_call.1} parent=1 // pred_fallthru
      _
    // Predicated region
    $region34: #{tpu_custom_call.1} parent=1 // pred_check
      _
    $region35: #{tpu_custom_call.1} parent=1 // pred_check_branch
      %74 = sbr.rel (0) target = $region37
    $region36: #{tpu_custom_call.1} parent=1 // pred_region
      %75 = dma.done [#allocation6], 128
    $region37: #{tpu_custom_call.1} parent=1 // pred_fallthru
      _
    // Predicated region
    $region38: #{tpu_custom_call.1} parent=1 // pred_check
      _
    $region39: #{tpu_custom_call.1} parent=1 // pred_check_branch
      %77 = sbr.rel (0) target = $region41
    $region40: #{tpu_custom_call.1} parent=1 // pred_region
      %78 = dma.done [#allocation6], 1024
    $region41: #{tpu_custom_call.1} parent=1 // pred_fallthru
      _
    // Predicated region
    $region42: #{tpu_custom_call.1} parent=1 // pred_check
      _
    $region43: #{tpu_custom_call.1} parent=1 // pred_check_branch
      %80 = sbr.rel (0) target = $region45
    $region44: #{tpu_custom_call.1} parent=1 // pred_region
      %81 = dma.done [#allocation9], 1024
    $region45: #{tpu_custom_call.1} parent=1 // pred_fallthru
      _
    %v83 = vld [vmem:[#allocation2] sm:$0xf]
    %v84 = vld [vmem:[#allocation2 + $0x4] sm:$0xf]
    %v85 = vld [vmem:[#allocation5] sm:$0xf]
    %v86 = vld [vmem:[#allocation5 + $0x4] sm:$0xf]
    %v87 = vld [vmem:[%s2] sm:$0x1]
    %v89 = vlaneseq
    %v90 = vshrl.u32 %v89, 7
    %v91 = vsub.s32 0, %v90
    %v92 = vrot.slane %v87, %v91
    %v96 = vunpack.c.l.b16 %v83
    %v97 = vunpack.c.l.b16 %v84
    %v98 = vpack.c.b16 %v97, %v96
    %v101 = vunpack.c.l.b16 %v85
    %v102 = vunpack.c.l.b16 %v86
    %v103 = vpack.c.b16 %v102, %v101
    %vm105 = vcmask 130048
    %v107 = vsel %vm105, %v98, 0
    %109 = vmatprep.subr.bf16.mxu0 0
    %110 = vmatpush1.bf16.msra.mxu0 0
    %111 = vmatprep.subr.bf16.mxu0 0
    %112 = vmatpush1.bf16.msra.mxu0 0
    %113 = vmatprep.subr.bf16.mxu0 0
    %114 = vmatpush1.bf16.msra.mxu0 0
    %115 = vmatprep.subr.bf16.mxu0 0
    %116 = vmatpush1.bf16.msra.mxu0 0
    %117 = vmatprep.subr.bf16.mxu0 0
    %118 = vmatpush1.bf16.msra.mxu0 0
    %119 = vmatprep.subr.bf16.mxu0 0
    %120 = vmatpush1.bf16.msra.mxu0 0
    %121 = vmatprep.subr.bf16.mxu0 0
    %122 = vmatpush1.bf16.msra.mxu0 0
    %123 = vmatprep.subr.bf16.mxu0 0
    %124 = vmatpush1.bf16.msra.mxu0 %v103
    %125 = vmatprep.subr.bf16.mxu0 0
    %126 = vmatpush2.bf16.msra.mxu0 0
    %127 = vmatprep.subr.bf16.mxu0 0
    %128 = vmatpush2.bf16.msra.mxu0 0
    %129 = vmatprep.subr.bf16.mxu0 0
    %130 = vmatpush2.bf16.msra.mxu0 0
    %131 = vmatprep.subr.bf16.mxu0 0
    %132 = vmatpush2.bf16.msra.mxu0 0
    %133 = vmatprep.subr.bf16.mxu0 0
    %134 = vmatpush2.bf16.msra.mxu0 0
    %135 = vmatprep.subr.bf16.mxu0 0
    %136 = vmatpush2.bf16.msra.mxu0 0
    %137 = vmatprep.subr.bf16.mxu0 0
    %138 = vmatpush2.bf16.msra.mxu0 0
    %139 = vmatprep.subr.bf16.mxu0 0
    %140 = vmatpush2.bf16.msra.mxu0 0
    %141 = vmatprep.mubr.bf16.mxu0 0
    %142 = vmatmul.mubr.bf16.gmra.mxu0 %v107
    %v143 = vpop.f32.mrf.mxu0
    %v144 = vadd.f32 %v92, %v143
    %v145 = vpop.f32.mrf.mxu0
    %v146 = vpop.f32.mrf.mxu0
    %v147 = vadd.f32 %v92, %v146
    %v148 = vpop.f32.mrf.mxu0
    %149 = vdwg.mxu0
    %v150 = vmax.f32 %v144, 0.0
    %v151 = vmax.f32 %v147, 0.0
    %v152 = vld [vmem:[#allocation7] sm:$0xf]
    %v153 = vld [vmem:[#allocation7 + $0x4] sm:$0xf]
    %v154 = vld [vmem:[#allocation7 + $0x8] sm:$0xf]
    %v155 = vld [vmem:[#allocation7 + $0xc] sm:$0xf]
    %v156 = vld [vmem:[#allocation7 + $0x10] sm:$0xf]
    %v157 = vld [vmem:[#allocation7 + $0x14] sm:$0xf]
    %v158 = vld [vmem:[#allocation7 + $0x18] sm:$0xf]
    %v159 = vld [vmem:[#allocation7 + $0x1c] sm:$0xf]
    %v160 = vld [vmem:[#allocation7 + $0x20] sm:$0xf]
    %v161 = vld [vmem:[#allocation7 + $0x24] sm:$0xf]
    %v162 = vld [vmem:[#allocation7 + $0x28] sm:$0xf]
    %v163 = vld [vmem:[#allocation7 + $0x2c] sm:$0xf]
    %v164 = vld [vmem:[#allocation7 + $0x30] sm:$0xf]
    %v165 = vld [vmem:[#allocation7 + $0x34] sm:$0xf]
    %v166 = vld [vmem:[#allocation7 + $0x38] sm:$0xf]
    %v167 = vld [vmem:[#allocation7 + $0x3c] sm:$0xf]
    %v168 = vld [vmem:[%s4] sm:$0x1]
    %v169 = vpack.c.bf16 %v151, %v150
    %v171 = vlaneseq
    %v172 = vshrl.u32 %v171, 7
    %v173 = vsub.s32 0, %v172
    %v174 = vrot.slane %v168, %v173
    %v192 = vunpack.c.l.b16 %v152
    %v193 = vunpack.c.l.b16 %v153
    %v194 = vunpack.c.l.b16 %v154
    %v195 = vunpack.c.l.b16 %v155
    %v196 = vunpack.c.l.b16 %v156
    %v197 = vunpack.c.l.b16 %v157
    %v198 = vunpack.c.l.b16 %v158
    %v199 = vunpack.c.l.b16 %v159
    %v200 = vunpack.c.l.b16 %v160
    %v201 = vunpack.c.l.b16 %v161
    %v202 = vunpack.c.l.b16 %v162
    %v203 = vunpack.c.l.b16 %v163
    %v204 = vunpack.c.l.b16 %v164
    %v205 = vunpack.c.l.b16 %v165
    %v206 = vunpack.c.l.b16 %v166
    %v207 = vunpack.c.l.b16 %v167
    %v208 = vpack.c.b16 %v193, %v192
    %v209 = vpack.c.b16 %v195, %v194
    %v210 = vpack.c.b16 %v197, %v196
    %v211 = vpack.c.b16 %v199, %v198
    %v212 = vpack.c.b16 %v201, %v200
    %v213 = vpack.c.b16 %v203, %v202
    %v214 = vpack.c.b16 %v205, %v204
    %v215 = vpack.c.b16 %v207, %v206
    %224 = vmatprep.subr.bf16.mxu0 0
    %225 = vmatpush1.bf16.msra.mxu0 %v215
    %226 = vmatprep.subr.bf16.mxu0 0
    %227 = vmatpush1.bf16.msra.mxu0 %v214
    %228 = vmatprep.subr.bf16.mxu0 0
    %229 = vmatpush1.bf16.msra.mxu0 %v213
    %230 = vmatprep.subr.bf16.mxu0 0
    %231 = vmatpush1.bf16.msra.mxu0 %v212
    %232 = vmatprep.subr.bf16.mxu0 0
    %233 = vmatpush1.bf16.msra.mxu0 %v211
    %234 = vmatprep.subr.bf16.mxu0 0
    %235 = vmatpush1.bf16.msra.mxu0 %v210
    %236 = vmatprep.subr.bf16.mxu0 0
    %237 = vmatpush1.bf16.msra.mxu0 %v209
    %238 = vmatprep.subr.bf16.mxu0 0
    %239 = vmatpush1.bf16.msra.mxu0 %v208
    %240 = vmatprep.subr.bf16.mxu0 0
    %241 = vmatpush2.bf16.msra.mxu0 0
    %242 = vmatprep.subr.bf16.mxu0 0
    %243 = vmatpush2.bf16.msra.mxu0 0
    %244 = vmatprep.subr.bf16.mxu0 0
    %245 = vmatpush2.bf16.msra.mxu0 0
    %246 = vmatprep.subr.bf16.mxu0 0
    %247 = vmatpush2.bf16.msra.mxu0 0
    %248 = vmatprep.subr.bf16.mxu0 0
    %249 = vmatpush2.bf16.msra.mxu0 0
    %250 = vmatprep.subr.bf16.mxu0 0
    %251 = vmatpush2.bf16.msra.mxu0 0
    %252 = vmatprep.subr.bf16.mxu0 0
    %253 = vmatpush2.bf16.msra.mxu0 0
    %254 = vmatprep.subr.bf16.mxu0 0
    %255 = vmatpush2.bf16.msra.mxu0 0
    %256 = vmatprep.mubr.bf16.mxu0 0
    %257 = vmatmul.mubr.bf16.gmra.mxu0 %v169
    %v258 = vpop.f32.mrf.mxu0
    %v259 = vadd.f32 %v174, %v258
    %v260 = vpop.f32.mrf.mxu0
    %v261 = vpop.f32.mrf.mxu0
    %v262 = vadd.f32 %v174, %v261
    %v263 = vpop.f32.mrf.mxu0
    %264 = vdwg.mxu0
    %v265 = vmax.f32 %v259, 0.0
    %v266 = vmax.f32 %v262, 0.0
    %v267 = vld [vmem:[#allocation8] sm:$0xf]
    %v268 = vld [vmem:[#allocation8 + $0x4] sm:$0xf]
    %v269 = vld [vmem:[#allocation8 + $0x8] sm:$0xf]
    %v270 = vld [vmem:[#allocation8 + $0xc] sm:$0xf]
    %v271 = vld [vmem:[#allocation8 + $0x10] sm:$0xf]
    %v272 = vld [vmem:[#allocation8 + $0x14] sm:$0xf]
    %v273 = vld [vmem:[#allocation8 + $0x18] sm:$0xf]
    %v274 = vld [vmem:[#allocation8 + $0x1c] sm:$0xf]
    %v275 = vld [vmem:[#allocation8 + $0x20] sm:$0xf]
    %v276 = vld [vmem:[#allocation8 + $0x24] sm:$0xf]
    %v277 = vld [vmem:[#allocation8 + $0x28] sm:$0xf]
    %v278 = vld [vmem:[#allocation8 + $0x2c] sm:$0xf]
    %v279 = vld [vmem:[#allocation8 + $0x30] sm:$0xf]
    %v280 = vld [vmem:[#allocation8 + $0x34] sm:$0xf]
    %v281 = vld [vmem:[#allocation8 + $0x38] sm:$0xf]
    %v282 = vld [vmem:[#allocation8 + $0x3c] sm:$0xf]
    %v283 = vld [vmem:[%s6] sm:$0x1]
    %v284 = vpack.c.bf16 %v266, %v265
    %v286 = vlaneseq
    %v287 = vshrl.u32 %v286, 7
    %v288 = vsub.s32 0, %v287
    %v289 = vrot.slane %v283, %v288
    %v307 = vunpack.c.l.b16 %v267
    %v308 = vunpack.c.l.b16 %v268
    %v309 = vunpack.c.l.b16 %v269
    %v310 = vunpack.c.l.b16 %v270
    %v311 = vunpack.c.l.b16 %v271
    %v312 = vunpack.c.l.b16 %v272
    %v313 = vunpack.c.l.b16 %v273
    %v314 = vunpack.c.l.b16 %v274
    %v315 = vunpack.c.l.b16 %v275
    %v316 = vunpack.c.l.b16 %v276
    %v317 = vunpack.c.l.b16 %v277
    %v318 = vunpack.c.l.b16 %v278
    %v319 = vunpack.c.l.b16 %v279
    %v320 = vunpack.c.l.b16 %v280
    %v321 = vunpack.c.l.b16 %v281
    %v322 = vunpack.c.l.b16 %v282
    %v323 = vpack.c.b16 %v308, %v307
    %v324 = vpack.c.b16 %v310, %v309
    %v325 = vpack.c.b16 %v312, %v311
    %v326 = vpack.c.b16 %v314, %v313
    %v327 = vpack.c.b16 %v316, %v315
    %v328 = vpack.c.b16 %v318, %v317
    %v329 = vpack.c.b16 %v320, %v319
    %v330 = vpack.c.b16 %v322, %v321
    %339 = vmatprep.subr.bf16.mxu0 0
    %340 = vmatpush1.bf16.msra.mxu0 %v330
    %341 = vmatprep.subr.bf16.mxu0 0
    %342 = vmatpush1.bf16.msra.mxu0 %v329
    %343 = vmatprep.subr.bf16.mxu0 0
    %344 = vmatpush1.bf16.msra.mxu0 %v328
    %345 = vmatprep.subr.bf16.mxu0 0
    %346 = vmatpush1.bf16.msra.mxu0 %v327
    %347 = vmatprep.subr.bf16.mxu0 0
    %348 = vmatpush1.bf16.msra.mxu0 %v326
    %349 = vmatprep.subr.bf16.mxu0 0
    %350 = vmatpush1.bf16.msra.mxu0 %v325
    %351 = vmatprep.subr.bf16.mxu0 0
    %352 = vmatpush1.bf16.msra.mxu0 %v324
    %353 = vmatprep.subr.bf16.mxu0 0
    %354 = vmatpush1.bf16.msra.mxu0 %v323
    %355 = vmatprep.subr.bf16.mxu0 0
    %356 = vmatpush2.bf16.msra.mxu0 0
    %357 = vmatprep.subr.bf16.mxu0 0
    %358 = vmatpush2.bf16.msra.mxu0 0
    %359 = vmatprep.subr.bf16.mxu0 0
    %360 = vmatpush2.bf16.msra.mxu0 0
    %361 = vmatprep.subr.bf16.mxu0 0
    %362 = vmatpush2.bf16.msra.mxu0 0
    %363 = vmatprep.subr.bf16.mxu0 0
    %364 = vmatpush2.bf16.msra.mxu0 0
    %365 = vmatprep.subr.bf16.mxu0 0
    %366 = vmatpush2.bf16.msra.mxu0 0
    %367 = vmatprep.subr.bf16.mxu0 0
    %368 = vmatpush2.bf16.msra.mxu0 0
    %369 = vmatprep.subr.bf16.mxu0 0
    %370 = vmatpush2.bf16.msra.mxu0 0
    %371 = vmatprep.mubr.bf16.mxu0 0
    %372 = vmatmul.mubr.bf16.gmra.mxu0 %v284
    %v373 = vpop.f32.mrf.mxu0
    %v374 = vadd.f32 %v289, %v373
    %v375 = vpop.f32.mrf.mxu0
    %v376 = vpop.f32.mrf.mxu0
    %v377 = vadd.f32 %v289, %v376
    %v378 = vpop.f32.mrf.mxu0
    %379 = vdwg.mxu0
    %v380 = vpack.c.bf16 %v377, %v374
    %v382 = vunpack.c.l.b16 %v380
    %v383 = vunpack.c.h.b16 %v380
    %v384 = vpack.c.b16 %v382, %v382
    %v385 = vpack.c.b16 %v383, %v383
    %388 = vst [vmem:[#allocation10] sm:$0xf] %v384
    %389 = vst [vmem:[#allocation10 + $0x4] sm:$0xf] %v385
    // Predicated region
    $region46: #{tpu_custom_call.1} parent=1 // pred_check
      _
    $region47: #{tpu_custom_call.1} parent=1 // pred_check_branch
      %391 = sbr.rel (0) target = $region49
    $region48: #{tpu_custom_call.1} parent=1 // pred_region
      %s393 = ssub.s32 128, 128
      %394 = vsyncadd [#allocation4], %s393
      %s395 = sshll.u32 [#allocation10], 4
      %s396 = int_to_ptr.vmem [resolvable:$true] %s395
      %401 = dma.vmem_to_hbm [thread:$0]  %s396, 128, %s7, [#allocation4], 64, 64, 4
    $region49: #{tpu_custom_call.1} parent=1 // pred_fallthru
      _
    // Predicated region
    $region50: #{tpu_custom_call.1} parent=1 // pred_check
      _
    $region51: #{tpu_custom_call.1} parent=1 // pred_check_branch
      %403 = sbr.rel (0) target = $region53
    $region52: #{tpu_custom_call.1} parent=1 // pred_region
      %404 = dma.done [#allocation4], 128
    $region53: #{tpu_custom_call.1} parent=1 // pred_fallthru
      _
    %405 = vsyncpa [#allocation3], 1
    %406 = vsyncpa [#allocation6], 1
    %407 = vsyncpa [#allocation9], 1
    %408 = vsyncpa [#allocation4], 1

</llo_original>
